<compile_context>
chip_gen: v7x
topology: tpu7x:2x2x1
jax: 0.10.0
libtpu: 0.0.40
codegen_flags: <defaults>
</compile_context>

<pallas_src>
import jax
import jax.numpy as jnp
from jax import lax
from jax.experimental import pallas as pl
from jax.experimental.pallas import tpu as pltpu

_LANE = 128                       # vreg lane width
_SUB = 8                          # vreg sublane height (f32)
_BLOCK_BYTES = 4 * 1024 * 1024    # ~4 MiB of logits per grid block (dtype-aware rows)


def _default_num_splits():
    """One leading-'parallel' grid split per TensorCore (1 on v5e/v6e, 2 on v7x)."""
    try:
        info = pltpu.get_tpu_info()
        for attr in ("num_cores", "core_count", "num_tensorcores"):
            v = getattr(info, attr, None)
            if v:
                return max(1, min(int(v), 8))
    except Exception:
        pass
    return 1


def _make_kernel(*, tr, sub_rows, n_flat, num_classes, lane_table_ok, pwm1_py):
    """Builds the kernel; all closure values are Python statics."""
    n_sub = tr // sub_rows

    def kernel(x_ref, code_ref, pwm1_ref, out_ref):
        p = pl.program_id(0)
        i = pl.program_id(1)

        @pl.when(i == 0)
        def _init():
            out_ref[...] = jnp.zeros_like(out_ref)

        # First flat row handled by this grid step.  Deliberately *unclamped*:
        # duplicate (clamped) blocks and the ragged tail fall out of the
        # validity mask below and contribute exactly zero.
        row0 = (p * pl.num_programs(1) + i) * tr

        pwm1_row = pwm1_ref[...]          # (1, 128) f32; unused on the general-C path

        def body(k, acc):
            r = pl.multiple_of(k * sub_rows, sub_rows)
            x = x_ref[pl.ds(r, sub_rows), :].astype(jnp.float32)      # (sub, 128)
            code = code_ref[pl.ds(r, sub_rows), :].astype(jnp.int32)  # (sub, 128)

            # Numerically stable softplus(-x):  max(-x, 0) + log1p(exp(-|x|))
            sp = jnp.maximum(-x, jnp.float32(0.0)) + jnp.log1p(jnp.exp(-jnp.abs(x)))

            if lane_table_ok:
                # class(flat_idx) == lane % C when C divides 128 -> lane table.
                pwm1 = pwm1_row                                       # broadcasts over sublanes
            else:
                # General C: statically unrolled per-class select chain.
                pwm1 = jnp.zeros_like(x)
                for cc in range(num_classes):
                    pwm1 = jnp.where(code == cc + 1, jnp.float32(pwm1_py[cc]), pwm1)

            # Validity of each flat element (ragged tail / duplicate blocks).
            ridx = lax.broadcasted_iota(jnp.int32, x.shape, 0)
            lidx = lax.broadcasted_iota(jnp.int32, x.shape, 1)
            flat_idx = (row0 + r + ridx) * _LANE + lidx               # < 2^31 assumed
            valid = flat_idx < n_flat

            # BCEWithLogits (reduction='sum') with pos_weight:
            #   negative: x + softplus(-x)
            #   positive: pw * softplus(-x) = (x + sp) + ((pw - 1) * sp - x)
            pos = jnp.where(code > 0, pwm1 * sp - x, jnp.float32(0.0))
            loss = jnp.where(valid, x + sp + pos, jnp.float32(0.0))

            # Fold the sub-tile into (8, 128) partial sums (major-dim reshape is
            # layout-free; pure VPU adds, no XLU in the inner loop).
            return acc + jnp.sum(loss.reshape(sub_rows // _SUB, _SUB, _LANE), axis=0)

        acc = lax.fori_loop(0, n_sub, body, jnp.zeros((_SUB, _LANE), jnp.float32))
        out_ref[...] += acc

    return kernel


def ovr_loss(logits, labels, class_counts, *, num_splits=None):
    """Weighted sum of per-class BCE-with-logits losses (scalar, matches OVRLoss).

    `class_counts` is a static Python sequence (like the PyTorch module's
    __init__ argument).  A zero count yields inf, same as the reference module.
    """
    n, c = logits.shape
    if num_splits is None:
        num_splits = _default_num_splits()

    counts = [float(v) for v in class_counts]
    total = float(sum(counts))
    pwm1_py = [(total - ci) / ci - 1.0 for ci in counts]      # pos_weight - 1

    lane_table_ok = (_LANE % c == 0)
    if lane_table_ok:
        pwm1_row = jnp.asarray([pwm1_py[l % c] for l in range(_LANE)],
                               dtype=jnp.float32).reshape(1, _LANE)
    else:
        pwm1_row = jnp.zeros((1, _LANE), jnp.float32)         # unused on general-C path

    # ---- flat lane stream (free reshape of the row-major (N, C) logits) ----
    n_flat = n * c
    rows = pl.cdiv(n_flat, _LANE)
    rows_arr = max(rows, 32)              # >= 32 rows so an int8-clean block always fits
    flat_arr = rows_arr * _LANE

    x_flat = logits.reshape(-1)
    code_dtype = jnp.int8 if c <= 126 else jnp.int32
    code2d = jnp.where(
        labels.astype(jnp.int32)[:, None] == jnp.arange(c, dtype=jnp.int32)[None, :],
        jnp.arange(1, c + 1, dtype=code_dtype)[None, :],
        jnp.array(0, dtype=code_dtype))
    code_flat = code2d.reshape(-1)
    if flat_arr != n_flat:                # only when N*C is not already aligned
        x_flat = jnp.pad(x_flat, (0, flat_arr - n_flat))
        code_flat = jnp.pad(code_flat, (0, flat_arr - n_flat))
    x2 = x_flat.reshape(rows_arr, _LANE)
    code2 = code_flat.reshape(rows_arr, _LANE)

    # ---- tiling -------------------------------------------------------------
    itemsize = jnp.dtype(logits.dtype).itemsize
    tr_cap = max(32, (_BLOCK_BYTES // (itemsize * _LANE)) // 32 * 32)
    tr = max(32, min(tr_cap, (rows_arr // 32) * 32))          # block rows, multiple of 32
    for cand in (128, 64, 32):                                # inner compute sub-tile rows
        if tr % cand == 0:
            sub_rows = min(tr, cand)
            break
    nblocks = pl.cdiv(rows_arr, tr)
    num_splits = max(1, min(num_splits, nblocks))
    inner = pl.cdiv(nblocks, num_splits)

    kernel = _make_kernel(tr=tr, sub_rows=sub_rows, n_flat=n_flat, num_classes=c,
                          lane_table_ok=lane_table_ok, pwm1_py=pwm1_py)

    def blk_idx(p_, i_):
        # Clamp so every DMA starts inside the array; duplicate blocks are
        # masked to zero inside the kernel via the flat-index validity test.
        return (jnp.minimum(p_ * inner + i_, nblocks - 1), 0)

    partial = pl.pallas_call(
        kernel,
        out_shape=jax.ShapeDtypeStruct((num_splits * _SUB, _LANE), jnp.float32),
        grid=(num_splits, inner),
        in_specs=[
            pl.BlockSpec((tr, _LANE), blk_idx),               # logits (native dtype)
            pl.BlockSpec((tr, _LANE), blk_idx),               # int8 label codes
            pl.BlockSpec((1, _LANE), lambda p_, i_: (0, 0)),  # VMEM-resident pw table
        ],
        out_specs=pl.BlockSpec((_SUB, _LANE), lambda p_, i_: (p_, 0)),
        compiler_params=pltpu.CompilerParams(
            dimension_semantics=("parallel", "arbitrary"),
            vmem_limit_bytes=32 * 1024 * 1024,
        ),
    )(x2, code2, pwm1_row)

    # Tiny final reduction over num_splits * 8 * 128 lane partial sums.
    return jnp.sum(partial)


def ovr_loss_ref(logits, labels, class_counts):
    """Pure-JAX reference mirroring the PyTorch module."""
    n, c = logits.shape
    counts = jnp.asarray(class_counts, dtype=jnp.float32)
    pw = (jnp.sum(counts) - counts) / counts                  # (C,)
    x = logits.astype(jnp.float32)
    y = jax.nn.one_hot(labels, c, dtype=jnp.float32)
    sp = jnp.logaddexp(0.0, -x)                               # softplus(-x)
    loss = (1.0 - y) * x + (1.0 + (pw[None, :] - 1.0) * y) * sp
    return jnp.sum(loss)


if __name__ == "__main__":
    key = jax.random.PRNGKey(0)
    k1, k2, k3, k4 = jax.random.split(key, 4)

    # Case 1: canonical small shape, C = 4 (lane-table fast path).
    n1, c1 = 8, 4
    counts1 = [10, 20, 30, 40]
    logits1 = jax.random.normal(k1, (n1, c1), dtype=jnp.float32)
    labels1 = jax.random.randint(k2, (n1,), 0, c1, dtype=jnp.int32)
    out1 = ovr_loss(logits1, labels1, counts1)
    jax.block_until_ready(out1)
    ref1 = ovr_loss_ref(logits1, labels1, counts1)
    assert jnp.allclose(out1, ref1, rtol=1e-5, atol=1e-4), (out1, ref1)

    # Case 2: C = 3 does not divide 128 (general per-class select path).
    n2, c2 = 10, 3
    counts2 = [5, 7, 9]
    logits2 = jax.random.normal(k3, (n2, c2), dtype=jnp.float32)
    labels2 = jax.random.randint(k4, (n2,), 0, c2, dtype=jnp.int32)
    out2 = ovr_loss(logits2, labels2, counts2)
    jax.block_until_ready(out2)
    ref2 = ovr_loss_ref(logits2, labels2, counts2)
    assert jnp.allclose(out2, ref2, rtol=1e-5, atol=1e-4), (out2, ref2)

    print("KERNEL_OK")
</pallas_src>

<mosaic_0001>
module attributes {stable_mosaic.version = 11 : i64} {
  func.func @kernel(%arg0: i32, %arg1: i32, %arg2: memref<32x128xf32, #tpu.memory_space<vmem>>, %arg3: memref<32x128xi8, #tpu.memory_space<vmem>>, %arg4: memref<1x128xf32, #tpu.memory_space<vmem>>, %arg5: memref<8x128xf32, #tpu.memory_space<vmem>>) attributes {dimension_semantics = [#tpu.dimension_semantics<parallel>, #tpu.dimension_semantics<arbitrary>], iteration_bounds = array<i64: 1, 1>, scalar_prefetch = 0 : i64, scratch_operands = 0 : i64, tpu.core_type = #tpu.core_type<tc>, window_params = [{transform_indices = @transform_0, window_bounds = array<i64: 32, 128>}, {transform_indices = @transform_1, window_bounds = array<i64: 32, 128>}, {pipeline_mode = #tpu.pipeline_mode<synchronous>, transform_indices = @transform_2, window_bounds = array<i64: 1, 128>}, {transform_indices = @transform_3, window_bounds = array<i64: 8, 128>}]} {
    %c0_i32 = arith.constant 0 : i32
    %0 = arith.cmpi eq, %arg1, %c0_i32 : i32
    %1 = arith.extui %0 : i1 to i32
    %c0_i32_0 = arith.constant 0 : i32
    %2 = arith.cmpi ne, %1, %c0_i32_0 : i32
    scf.if %2 {
      %cst_19 = arith.constant 0.000000e+00 : f32
      %52 = vector.broadcast %cst_19 : f32 to vector<8x128xf32>
      %c0_20 = arith.constant 0 : index
      %c0_21 = arith.constant 0 : index
      %53 = vector.load %arg5[%c0_20, %c0_21] : memref<8x128xf32, #tpu.memory_space<vmem>>, vector<8x128xf32>
      tpu.vector_store %arg5[%c0_20, %c0_21], %52 {strides = array<i32>} : memref<8x128xf32, #tpu.memory_space<vmem>>, vector<8x128xf32>,
    } else {
    }
    %c1_i32 = arith.constant 1 : i32
    %3 = arith.muli %arg0, %c1_i32 : i32
    %4 = arith.addi %3, %arg1 : i32
    %c32_i32 = arith.constant 32 : i32
    %5 = arith.muli %4, %c32_i32 : i32
    %c0 = arith.constant 0 : index
    %c0_1 = arith.constant 0 : index
    %6 = vector.load %arg4[%c0, %c0_1] : memref<1x128xf32, #tpu.memory_space<vmem>>, vector<1x128xf32>
    %cst = arith.constant 0.000000e+00 : f32
    %7 = vector.broadcast %cst : f32 to vector<8x128xf32>
    %c0_i32_2 = arith.constant 0 : i32
    %c32_i32_3 = arith.constant 32 : i32
    %8 = arith.muli %c0_i32_2, %c32_i32_3 : i32
    %9 = tpu.assume_multiple %8, 32 : i32
    %10 = arith.index_cast %9 : i32 to index
    %c0_4 = arith.constant 0 : index
    %11 = vector.load %arg2[%10, %c0_4] : memref<32x128xf32, #tpu.memory_space<vmem>>, vector<32x128xf32>
    %12 = arith.index_cast %9 : i32 to index
    %c0_5 = arith.constant 0 : index
    %13 = vector.load %arg3[%12, %c0_5] : memref<32x128xi8, #tpu.memory_space<vmem>>, vector<32x128xi8>
    %14 = arith.extsi %13 : vector<32x128xi8> to vector<32x128xi32>
    %cst_6 = arith.constant 0.000000e+00 : f32
    %15 = vector.broadcast %cst_6 : f32 to vector<32x128xf32>
    %16 = arith.subf %15, %11 : vector<32x128xf32>
    %cst_7 = arith.constant 0.000000e+00 : f32
    %17 = vector.broadcast %cst_7 : f32 to vector<32x128xf32>
    %18 = arith.maximumf %16, %17 : vector<32x128xf32>
    %19 = math.absf %11 : vector<32x128xf32>
    %cst_8 = arith.constant 0.000000e+00 : f32
    %20 = vector.broadcast %cst_8 : f32 to vector<32x128xf32>
    %21 = arith.subf %20, %19 : vector<32x128xf32>
    %22 = math.exp %21 : vector<32x128xf32>
    %23 = math.log1p %22 : vector<32x128xf32>
    %24 = arith.addf %18, %23 : vector<32x128xf32>
    %25 = tpu.iota {dimensions = array<i32: 0>} : vector<32x128xi32>
    %26 = tpu.iota {dimensions = array<i32: 1>} : vector<32x128xi32>
    %27 = arith.addi %5, %9 : i32
    %28 = vector.broadcast %27 : i32 to vector<32x128xi32>
    %29 = arith.addi %28, %25 : vector<32x128xi32>
    %c128_i32 = arith.constant 128 : i32
    %30 = vector.broadcast %c128_i32 : i32 to vector<32x128xi32>
    %31 = arith.muli %29, %30 : vector<32x128xi32>
    %32 = arith.addi %31, %26 : vector<32x128xi32>
    %c32_i32_9 = arith.constant 32 : i32
    %33 = vector.broadcast %c32_i32_9 : i32 to vector<32x128xi32>
    %34 = arith.cmpi slt, %32, %33 : vector<32x128xi32>
    %c0_i32_10 = arith.constant 0 : i32
    %35 = vector.broadcast %c0_i32_10 : i32 to vector<32x128xi32>
    %36 = arith.cmpi sgt, %14, %35 : vector<32x128xi32>
    %37 = vector.broadcast %6 : vector<1x128xf32> to vector<32x128xf32>
    %38 = arith.mulf %37, %24 : vector<32x128xf32>
    %39 = arith.subf %38, %11 : vector<32x128xf32>
    %cst_11 = arith.constant 0.000000e+00 : f32
    %40 = vector.broadcast %cst_11 : f32 to vector<32x128xf32>
    %41 = arith.select %36, %39, %40 : vector<32x128xi1>, vector<32x128xf32>
    %42 = arith.addf %11, %24 : vector<32x128xf32>
    %43 = arith.addf %42, %41 : vector<32x128xf32>
    %cst_12 = arith.constant 0.000000e+00 : f32
    %44 = vector.broadcast %cst_12 : f32 to vector<32x128xf32>
    %45 = arith.select %34, %43, %44 : vector<32x128xi1>, vector<32x128xf32>
    %46 = vector.shape_cast %45 : vector<32x128xf32> to vector<4x8x128xf32>
    %cst_13 = arith.constant dense<0.000000e+00> : vector<8x128xf32>
    %47 = vector.multi_reduction <add>, %46, %cst_13 [0] : vector<4x8x128xf32> to vector<8x128xf32>
    %48 = arith.addf %7, %47 : vector<8x128xf32>
    %c1_i32_14 = arith.constant 1 : i32
    %c0_15 = arith.constant 0 : index
    %c0_16 = arith.constant 0 : index
    %49 = vector.load %arg5[%c0_15, %c0_16] : memref<8x128xf32, #tpu.memory_space<vmem>>, vector<8x128xf32>
    %50 = arith.addf %49, %48 : vector<8x128xf32>
    %c0_17 = arith.constant 0 : index
    %c0_18 = arith.constant 0 : index
    %51 = vector.load %arg5[%c0_17, %c0_18] : memref<8x128xf32, #tpu.memory_space<vmem>>, vector<8x128xf32>
    tpu.vector_store %arg5[%c0_17, %c0_18], %50 {strides = array<i32>} : memref<8x128xf32, #tpu.memory_space<vmem>>, vector<8x128xf32>,
    return
  }
  func.func @transform_0(%arg0: i32, %arg1: i32) -> (i32, i32) {
    %c1_i32 = arith.constant 1 : i32
    %0 = arith.muli %arg0, %c1_i32 : i32
    %1 = arith.addi %0, %arg1 : i32
    %c0_i32 = arith.constant 0 : i32
    %2 = arith.minsi %1, %c0_i32 : i32
    %c0_i32_0 = arith.constant 0 : i32
    %c0_i32_1 = arith.constant 0 : i32
    return %2, %c0_i32_0 : i32, i32
  }
  func.func @transform_1(%arg0: i32, %arg1: i32) -> (i32, i32) {
    %c1_i32 = arith.constant 1 : i32
    %0 = arith.muli %arg0, %c1_i32 : i32
    %1 = arith.addi %0, %arg1 : i32
    %c0_i32 = arith.constant 0 : i32
    %2 = arith.minsi %1, %c0_i32 : i32
    %c0_i32_0 = arith.constant 0 : i32
    %c0_i32_1 = arith.constant 0 : i32
    return %2, %c0_i32_0 : i32, i32
  }
  func.func @transform_2(%arg0: i32, %arg1: i32) -> (i32, i32) {
    %c0_i32 = arith.constant 0 : i32
    %c0_i32_0 = arith.constant 0 : i32
    %c0_i32_1 = arith.constant 0 : i32
    return %c0_i32, %c0_i32_0 : i32, i32
  }
  func.func @transform_3(%arg0: i32, %arg1: i32) -> (i32, i32) {
    %c0_i32 = arith.constant 0 : i32
    %c0_i32_0 = arith.constant 0 : i32
    return %arg0, %c0_i32 : i32, i32
  }
}

</mosaic_0001>

<llo_original>
// kernel: tpu_custom_call.1
$region0: #{tpu_custom_call.1}
  #allocation0 [shape = 'u32[]', space=smem, size = 0x4, offset = 0x4, fixed_abs, tag = 'smem constant byte address 0x4 - core index']
  #allocation1 [shape = 'u32[144,128]{1,0:T(1,128)}', space=vmem, size = 0x12000, scoped, tag = 'internal scratch']
  %s0 = inlined_call_operand.hbm [shape: f32[32,128], index: 0, kind: input, shape index: {}]
  %s1 = inlined_call_operand.hbm [shape: s8[32,128], index: 1, kind: input, shape index: {}]
  %s2 = inlined_call_operand.vmem [shape: f32[1,128], index: 2, kind: input, shape index: {}]
  %s3 = inlined_call_operand.hbm [shape: f32[8,128], index: 3, kind: output, shape index: {}]
  %s4 = sld [smem:[#allocation0]]
  $region34: #{tpu_custom_call.1} parent=0
    _
  %s6 = ssub.s32 1, %s4
  %s7 = scalar_select 0, %s6, %s4
  $region1: #{tpu_custom_call.1} parent=0
    #allocation2 [shape = 'u8[16384]{0}', space=vmem, size = 0x4000, scoped, tag = 'input window, operand 0, single buffered']
    #allocation3 [shape = 's32[1]{0}', space=sflag, size = 0x4, scoped, tag = 'scoped memory for tpu_custom_call.1']
    #allocation4 [shape = 's32[1]{0}', space=sflag, size = 0x4, scoped, tag = 'scoped memory for tpu_custom_call.1']
    #allocation5 [shape = 'u8[4096]{0}', space=vmem, size = 0x1000, scoped, tag = 'input window, operand 1, single buffered']
    #allocation6 [shape = 's32[1]{0}', space=sflag, size = 0x4, scoped, tag = 'scoped memory for tpu_custom_call.1']
    #allocation7 [shape = 'u8[4096]{0}', space=vmem, size = 0x1000, scoped, tag = 'output window, operand 0, single buffered']
    %8 = vsyncpa [#allocation3], 0
    %9 = vsyncpa [#allocation6], 0
    %10 = vsyncpa [#allocation4], 0
    // Predicated region
    $region2: #{tpu_custom_call.1} parent=1 // pred_check
      _
    $region3: #{tpu_custom_call.1} parent=1 // pred_check_branch
      %12 = sbr.rel (0) target = $region5
    $region4: #{tpu_custom_call.1} parent=1 // pred_region
      %s13 = sadd.s32 0, 0
      %p14 = scmp.lt.s32.totalorder %s13, 0
      %s15 = scalar_select %p14, %s13, 0
      %s16 = smul.u32 4, %s15
      %s18 = ssub.s32 512, 512
      %19 = vsyncadd [#allocation3], %s18
      %s20 = smul.addr %s16, 128
      %s21 = scalar_lea.hbm %s0, %s20
      %s22 = sshll.u32 [#allocation2], 4
      %s23 = int_to_ptr.vmem [resolvable:$true] %s22
      %28 = dma.hbm_to_vmem [thread:$0]  %s21, 512, %s23, [#allocation3], 128, 128, 8
    $region5: #{tpu_custom_call.1} parent=1 // pred_fallthru
      _
    // Predicated region
    $region6: #{tpu_custom_call.1} parent=1 // pred_check
      _
    $region7: #{tpu_custom_call.1} parent=1 // pred_check_branch
      %30 = sbr.rel (0) target = $region9
    $region8: #{tpu_custom_call.1} parent=1 // pred_region
      %s31 = sadd.s32 0, 0
      %p32 = scmp.lt.s32.totalorder %s31, 0
      %s33 = scalar_select %p32, %s31, 0
      %s35 = ssub.s32 128, 128
      %36 = vsyncadd [#allocation6], %s35
      %s37 = smul.addr %s33, 128
      %s38 = scalar_lea.hbm %s1, %s37
      %s40 = sshll.u32 [#allocation5], 4
      %s41 = int_to_ptr.vmem [resolvable:$true] %s40
      %43 = dma.hbm_to_vmem [thread:$0]  %s38, 128, %s41, [#allocation6]
    $region9: #{tpu_custom_call.1} parent=1 // pred_fallthru
      _
    // Predicated region
    $region10: #{tpu_custom_call.1} parent=1 // pred_check
      _
    $region11: #{tpu_custom_call.1} parent=1 // pred_check_branch
      %45 = sbr.rel (0) target = $region13
    $region12: #{tpu_custom_call.1} parent=1 // pred_region
      _
    $region13: #{tpu_custom_call.1} parent=1 // pred_fallthru
      _
    // Predicated region
    $region14: #{tpu_custom_call.1} parent=1 // pred_check
      _
    $region15: #{tpu_custom_call.1} parent=1 // pred_check_branch
      %47 = sbr.rel (0) target = $region17
    $region16: #{tpu_custom_call.1} parent=1 // pred_region
      %48 = dma.done [#allocation3], 512
    $region17: #{tpu_custom_call.1} parent=1 // pred_fallthru
      _
    // Predicated region
    $region18: #{tpu_custom_call.1} parent=1 // pred_check
      _
    $region19: #{tpu_custom_call.1} parent=1 // pred_check_branch
      %50 = sbr.rel (0) target = $region21
    $region20: #{tpu_custom_call.1} parent=1 // pred_region
      %51 = dma.done [#allocation6], 128
    $region21: #{tpu_custom_call.1} parent=1 // pred_fallthru
      _
    %s52 = sadd.s32 0, 0
    %p53 = scmp.lt.s32.totalorder %s52, 0
    %s54 = scalar_select %p53, %s52, 0
    %s55 = smul.u32 4, %s54
    %s56 = sadd.s32 0, 0
    %p57 = scmp.lt.s32.totalorder %s56, 0
    %s58 = scalar_select %p57, %s56, 0
    %p59 = scmp.eq.s32.totalorder 0, 0
    // Predicated region
    $region22: #{tpu_custom_call.1} parent=1 // pred_check
      %p60 = pneg %p59
    $region23: #{tpu_custom_call.1} parent=1 // pred_check_branch
      %62 = sbr.rel (%p60) target = $region25
    $region24: #{tpu_custom_call.1} parent=1 // pred_region
      %63 = vst [vmem:[#allocation7] sm:$0xff] 0.0
    $region25: #{tpu_custom_call.1} parent=1 // pred_fallthru
      _
    %s64 = sadd.s32 0, 0
    %s65 = smul.u32 %s64, 32
    %v66 = vld [vmem:[%s2] sm:$0x1]
    %v67 = vld [vmem:[#allocation2] sm:$0xff]
    %v68 = vld [vmem:[#allocation2 + $0x8] sm:$0xff]
    %v69 = vld [vmem:[#allocation2 + $0x10] sm:$0xff]
    %v70 = vld [vmem:[#allocation2 + $0x18] sm:$0xff]
    %v71 = vld [vmem:[#allocation5] sm:$0xff]
    %v72 = vunpack.c.0.s8 %v71
    %v73 = vunpack.c.1.s8 %v71
    %v74 = vunpack.c.2.s8 %v71
    %v75 = vunpack.c.3.s8 %v71
    %v76 = vsub.f32 0.0, %v67
    %v77 = vsub.f32 0.0, %v68
    %v78 = vsub.f32 0.0, %v69
    %v79 = vsub.f32 0.0, %v70
    %v80 = vmax.f32 %v76, 0.0
    %v81 = vmax.f32 %v77, 0.0
    %v82 = vmax.f32 %v78, 0.0
    %v83 = vmax.f32 %v79, 0.0
    %v84 = vand.u32 2147483647, %v67
    %v85 = vand.u32 2147483647, %v68
    %v86 = vand.u32 2147483647, %v69
    %v87 = vand.u32 2147483647, %v70
    %v88 = vsub.f32 0.0, %v84
    %v89 = vsub.f32 0.0, %v85
    %v90 = vsub.f32 0.0, %v86
    %v91 = vsub.f32 0.0, %v87
    %v92 = vmul.f32 %v88, 1.442695
    %v93 = vpow.pop %v92
    %v94 = vmul.f32 %v89, 1.442695
    %v95 = vpow.pop %v94
    %v96 = vmul.f32 %v90, 1.442695
    %v97 = vpow.pop %v96
    %v98 = vmul.f32 %v91, 1.442695
    %v99 = vpow.pop %v98
    %v100 = vadd.f32 %v93, 1.0
    %v101 = vlog2.pop %v100
    %v102 = vmul.f32 %v101, 0.6931472
    %v103 = vmul.f32 -0.5, %v93
    %v104 = vadd.f32 %v103, 1.0
    %v105 = vmul.f32 %v104, %v93
    %v106 = vand.u32 2147483647, %v93
    %vm107 = vcmp.lt.f32.partialorder %v106, 0.0004427343
    %v108 = vsel %vm107, %v105, %v102
    %v109 = vadd.f32 %v95, 1.0
    %v110 = vlog2.pop %v109
    %v111 = vmul.f32 %v110, 0.6931472
    %v112 = vmul.f32 -0.5, %v95
    %v113 = vadd.f32 %v112, 1.0
    %v114 = vmul.f32 %v113, %v95
    %v115 = vand.u32 2147483647, %v95
    %vm116 = vcmp.lt.f32.partialorder %v115, 0.0004427343
    %v117 = vsel %vm116, %v114, %v111
    %v118 = vadd.f32 %v97, 1.0
    %v119 = vlog2.pop %v118
    %v120 = vmul.f32 %v119, 0.6931472
    %v121 = vmul.f32 -0.5, %v97
    %v122 = vadd.f32 %v121, 1.0
    %v123 = vmul.f32 %v122, %v97
    %v124 = vand.u32 2147483647, %v97
    %vm125 = vcmp.lt.f32.partialorder %v124, 0.0004427343
    %v126 = vsel %vm125, %v123, %v120
    %v127 = vadd.f32 %v99, 1.0
    %v128 = vlog2.pop %v127
    %v129 = vmul.f32 %v128, 0.6931472
    %v130 = vmul.f32 -0.5, %v99
    %v131 = vadd.f32 %v130, 1.0
    %v132 = vmul.f32 %v131, %v99
    %v133 = vand.u32 2147483647, %v99
    %vm134 = vcmp.lt.f32.partialorder %v133, 0.0004427343
    %v135 = vsel %vm134, %v132, %v129
    %v136 = vadd.f32 %v80, %v108
    %v137 = vadd.f32 %v81, %v117
    %v138 = vadd.f32 %v82, %v126
    %v139 = vadd.f32 %v83, %v135
    %v140 = vlaneseq
    %v141 = vshrl.u32 %v140, 7
    %v142 = vadd.s32 %v141, 8
    %v143 = vadd.s32 %v141, 16
    %v144 = vadd.s32 %v141, 24
    %v145 = vlaneseq
    %v146 = vand.u32 %v145, 127
    %s147 = sadd.s32 %s65, 0
    %v148 = vstv %s147
    %v149 = vadd.s32 %v148, %v141
    %v150 = vadd.s32 %v148, %v142
    %v151 = vadd.s32 %v148, %v143
    %v152 = vadd.s32 %v148, %v144
    %v153 = vmul.u32 %v149, 128
    %v154 = vmul.u32 %v150, 128
    %v155 = vmul.u32 %v151, 128
    %v156 = vmul.u32 %v152, 128
    %v157 = vadd.s32 %v153, %v146
    %v158 = vadd.s32 %v154, %v146
    %v159 = vadd.s32 %v155, %v146
    %v160 = vadd.s32 %v156, %v146
    %vm161 = vcmp.lt.s32.totalorder %v157, 32
    %vm162 = vcmp.lt.s32.totalorder %v158, 32
    %vm163 = vcmp.lt.s32.totalorder %v159, 32
    %vm164 = vcmp.lt.s32.totalorder %v160, 32
    %vm165 = vcmp.gt.s32.totalorder %v72, 0
    %vm166 = vcmp.gt.s32.totalorder %v73, 0
    %vm167 = vcmp.gt.s32.totalorder %v74, 0
    %vm168 = vcmp.gt.s32.totalorder %v75, 0
    %v170 = vlaneseq
    %v171 = vshrl.u32 %v170, 7
    %v172 = vsub.s32 0, %v171
    %v173 = vrot.slane %v66, %v172
    %v175 = vmul.f32 %v173, %v136
    %v176 = vmul.f32 %v173, %v137
    %v177 = vmul.f32 %v173, %v138
    %v178 = vmul.f32 %v173, %v139
    %v179 = vsub.f32 %v175, %v67
    %v180 = vsub.f32 %v176, %v68
    %v181 = vsub.f32 %v177, %v69
    %v182 = vsub.f32 %v178, %v70
    %v183 = vsel %vm165, %v179, 0.0
    %v184 = vsel %vm166, %v180, 0.0
    %v185 = vsel %vm167, %v181, 0.0
    %v186 = vsel %vm168, %v182, 0.0
    %v187 = vadd.f32 %v67, %v136
    %v188 = vadd.f32 %v68, %v137
    %v189 = vadd.f32 %v69, %v138
    %v190 = vadd.f32 %v70, %v139
    %v191 = vadd.f32 %v187, %v183
    %v192 = vadd.f32 %v188, %v184
    %v193 = vadd.f32 %v189, %v185
    %v194 = vadd.f32 %v190, %v186
    %v195 = vsel %vm161, %v191, 0.0
    %v196 = vsel %vm162, %v192, 0.0
    %v197 = vsel %vm163, %v193, 0.0
    %v198 = vsel %vm164, %v194, 0.0
    %v199 = vadd.f32 %v195, %v196
    %v200 = vadd.f32 %v199, %v197
    %v201 = vadd.f32 %v200, %v198
    %v202 = vadd.f32 %v201, 0.0
    %v203 = vld [vmem:[#allocation7] sm:$0xff]
    %v204 = vadd.f32 %v203, %v202
    %205 = vst [vmem:[#allocation7] sm:$0xff] %v204
    // Predicated region
    $region26: #{tpu_custom_call.1} parent=1 // pred_check
      _
    $region27: #{tpu_custom_call.1} parent=1 // pred_check_branch
      %207 = sbr.rel (0) target = $region29
    $region28: #{tpu_custom_call.1} parent=1 // pred_region
      %s209 = ssub.s32 128, 128
      %210 = vsyncadd [#allocation4], %s209
      %s212 = sshll.u32 [#allocation7], 4
      %s213 = int_to_ptr.vmem [resolvable:$true] %s212
      %215 = dma.vmem_to_hbm [thread:$0]  %s213, 128, %s3, [#allocation4]
    $region29: #{tpu_custom_call.1} parent=1 // pred_fallthru
      _
    // Predicated region
    $region30: #{tpu_custom_call.1} parent=1 // pred_check
      _
    $region31: #{tpu_custom_call.1} parent=1 // pred_check_branch
      %217 = sbr.rel (0) target = $region33
    $region32: #{tpu_custom_call.1} parent=1 // pred_region
      %218 = dma.done [#allocation4], 128
    $region33: #{tpu_custom_call.1} parent=1 // pred_fallthru
      _
    %219 = vsyncpa [#allocation3], 1
    %220 = vsyncpa [#allocation6], 1
    %221 = vsyncpa [#allocation4], 1

</llo_original>
